<compile_context>
chip_gen: v5e
topology: v5e:2x2
jax: 0.10.0
libtpu: 0.0.40
codegen_flags: <defaults>
</compile_context>

<pallas_src>
import functools

import jax
import jax.numpy as jnp
from jax import lax
from jax.experimental import pallas as pl
from jax.experimental.pallas import tpu as pltpu


def _round_up(x: int, m: int) -> int:
    return (x + m - 1) // m * m


def _lora_kernel(x_ref, wd_ref, wu_ref, o_ref):
    # x_ref : (1, tile_s, D_in)  active-row tile of hidden_states (already unmasked region)
    # wd_ref: (rank, D_in)       down weight, original nn.Linear layout (lane-dense)
    # wu_ref: (rank, D_out)      up weight, transposed and pre-scaled by alpha/rank
    # o_ref : (1, tile_s, D_out)
    x = x_ref[0]                                                   # (tile_s, D_in)
    d = lax.dot_general(x, wd_ref[...],
                        dimension_numbers=(((1,), (1,)), ((), ())),
                        preferred_element_type=jnp.float32)        # (tile_s, rank)
    u = jnp.dot(d, wu_ref[...],
                preferred_element_type=jnp.float32)                # (tile_s, D_out)
    o_ref[0] = u.astype(o_ref.dtype)


def lora_linear_forward(hidden_states, w_down, w_up, *,
                        network_alpha=None, rank=4,
                        cond_width=512, cond_height=512,
                        number=0, n_loras=1, tile_s=256):
    """Pallas implementation of LoRALinearLayer.forward.

    hidden_states: (B, S, D_in)
    w_down       : (rank, D_in)   -- nn.Linear(in_features, rank).weight
    w_up         : (D_out, rank)  -- nn.Linear(rank, out_features).weight
    """
    B, S, D_in = hidden_states.shape
    D_out = w_up.shape[0]
    orig_dtype = hidden_states.dtype
    compute_dtype = w_down.dtype

    # Same integer arithmetic as the PyTorch forward (note python // precedence).
    cond_size = cond_width // 8 * cond_height // 8 * 16 // 64
    block_size = S - cond_size * n_loras
    mask_lo = block_size + number * cond_size           # rows < mask_lo are zeroed
    mask_hi = block_size + (number + 1) * cond_size     # rows >= mask_hi are zeroed
    scale = (network_alpha / rank) if network_alpha is not None else 1.0

    # Static active-row window (Python ints -> static slice, no recompute per call).
    lo = max(0, min(mask_lo, S))
    hi = max(0, min(mask_hi, S))
    s_act = hi - lo
    if s_act <= 0:
        # Entire output is masked out.
        return jnp.zeros((B, S, D_out), dtype=orig_dtype)

    # Choose a tile size that is sublane-friendly (multiple of 8 for f32) and
    # no larger than needed; pad the active rows up to a multiple of it.
    tile_s = max(8, min(tile_s, _round_up(s_act, 8)))
    tile_s = _round_up(tile_s, 8)
    s_pad = _round_up(s_act, tile_s)

    x_act = jnp.asarray(hidden_states[:, lo:hi, :], compute_dtype)   # (B, s_act, D_in)
    if s_pad != s_act:
        x_act = jnp.pad(x_act, ((0, 0), (0, s_pad - s_act), (0, 0)))

    wd = jnp.asarray(w_down, compute_dtype)                           # (rank, D_in) lane-dense
    wu_t = jnp.asarray(w_up, compute_dtype).T * jnp.asarray(scale, compute_dtype)  # (rank, D_out)

    grid = (B, s_pad // tile_s)

    out_act = pl.pallas_call(
        _lora_kernel,
        out_shape=jax.ShapeDtypeStruct((B, s_pad, D_out), orig_dtype),
        grid_spec=pltpu.PrefetchScalarGridSpec(
            num_scalar_prefetch=0,
            grid=grid,
            in_specs=[
                pl.BlockSpec((1, tile_s, D_in), lambda b, s: (b, s, 0)),
                pl.BlockSpec((wd.shape[0], D_in), lambda b, s: (0, 0)),
                pl.BlockSpec((wu_t.shape[0], D_out), lambda b, s: (0, 0)),
            ],
            out_specs=pl.BlockSpec((1, tile_s, D_out), lambda b, s: (b, s, 0)),
        ),
        compiler_params=pltpu.CompilerParams(
            dimension_semantics=("parallel", "parallel")),
    )(x_act, wd, wu_t)

    # Scatter the active rows back into an all-zero (masked) output.
    out = jnp.zeros((B, S, D_out), dtype=orig_dtype)
    out = lax.dynamic_update_slice(out, out_act[:, :s_act, :], (0, lo, 0))
    return out


def lora_linear_reference(hidden_states, w_down, w_up, *,
                          network_alpha, rank, cond_width, cond_height,
                          number, n_loras):
    """Pure-JAX reference mirroring the PyTorch forward exactly."""
    B, S, D_in = hidden_states.shape
    orig_dtype = hidden_states.dtype
    dtype = w_down.dtype
    cond_size = cond_width // 8 * cond_height // 8 * 16 // 64
    block_size = S - cond_size * n_loras
    rows = jnp.arange(S)
    keep = ((rows >= block_size + number * cond_size)
            & (rows < block_size + (number + 1) * cond_size)).astype(dtype)
    x = hidden_states * keep[None, :, None]
    down = jnp.einsum("bsd,rd->bsr", x.astype(dtype), w_down)
    up = jnp.einsum("bsr,or->bso", down, w_up)
    if network_alpha is not None:
        up = up * (network_alpha / rank)
    return up.astype(orig_dtype)


if __name__ == "__main__":
    # Small, deterministic example.
    # in_features is pinned to 3072 by the hard-coded mask width in the
    # PyTorch module (mask shape (B, S, 3072) must broadcast against x).
    B = 2
    IN_FEATURES = 3072
    OUT_FEATURES = 128
    RANK = 4
    NETWORK_ALPHA = 8.0
    COND_W = COND_H = 64          # -> cond_size = 16
    NUMBER, N_LORAS = 0, 1
    S = 32                        # block_size = 32 - 16 = 16

    key = jax.random.PRNGKey(0)
    kx, kd, ku = jax.random.split(key, 3)
    x = jax.random.normal(kx, (B, S, IN_FEATURES), dtype=jnp.float32)
    # down.weight ~ N(0, 1/rank) as in the module __init__.
    w_down = (1.0 / RANK) * jax.random.normal(kd, (RANK, IN_FEATURES), dtype=jnp.float32)
    # NOTE: the module inits up.weight to zeros; use a deterministic nonzero
    # init here so the kernel output is non-trivial to verify.
    w_up = 0.02 * jax.random.normal(ku, (OUT_FEATURES, RANK), dtype=jnp.float32)

    out = lora_linear_forward(
        x, w_down, w_up,
        network_alpha=NETWORK_ALPHA, rank=RANK,
        cond_width=COND_W, cond_height=COND_H,
        number=NUMBER, n_loras=N_LORAS, tile_s=256)
    out = jax.block_until_ready(out)

    ref = lora_linear_reference(
        x, w_down, w_up,
        network_alpha=NETWORK_ALPHA, rank=RANK,
        cond_width=COND_W, cond_height=COND_H,
        number=NUMBER, n_loras=N_LORAS)

    assert out.shape == (B, S, OUT_FEATURES)
    assert jnp.allclose(out, ref, atol=1e-4, rtol=1e-4), "mismatch vs reference"
    print("KERNEL_OK")
</pallas_src>

<mosaic_0001>
module attributes {stable_mosaic.version = 11 : i64} {
  func.func @_lora_kernel(%arg0: i32, %arg1: i32, %arg2: memref<1x16x3072xf32, #tpu.memory_space<vmem>>, %arg3: memref<4x3072xf32, #tpu.memory_space<vmem>>, %arg4: memref<4x128xf32, #tpu.memory_space<vmem>>, %arg5: memref<1x16x128xf32, #tpu.memory_space<vmem>>) attributes {dimension_semantics = [#tpu.dimension_semantics<parallel>, #tpu.dimension_semantics<parallel>], iteration_bounds = array<i64: 2, 1>, scalar_prefetch = 0 : i64, scratch_operands = 0 : i64, tpu.core_type = #tpu.core_type<tc>, window_params = [{transform_indices = @transform_0, window_bounds = array<i64: 1, 16, 3072>}, {pipeline_mode = #tpu.pipeline_mode<synchronous>, transform_indices = @transform_1, window_bounds = array<i64: 4, 3072>}, {pipeline_mode = #tpu.pipeline_mode<synchronous>, transform_indices = @transform_2, window_bounds = array<i64: 4, 128>}, {transform_indices = @transform_3, window_bounds = array<i64: 1, 16, 128>}]} {
    %c0 = arith.constant 0 : index
    %c0_0 = arith.constant 0 : index
    %c0_1 = arith.constant 0 : index
    %0 = vector.load %arg2[%c0, %c0_0, %c0_1] : memref<1x16x3072xf32, #tpu.memory_space<vmem>>, vector<1x16x3072xf32>
    %1 = vector.shape_cast %0 : vector<1x16x3072xf32> to vector<16x3072xf32>
    %c0_2 = arith.constant 0 : index
    %c0_3 = arith.constant 0 : index
    %2 = vector.load %arg3[%c0_2, %c0_3] : memref<4x3072xf32, #tpu.memory_space<vmem>>, vector<4x3072xf32>
    %cst = arith.constant dense<0.000000e+00> : vector<16x4xf32>
    %3 = tpu.matmul %1, %2, %cst {dimension_numbers = #tpu.dot_dimension_numbers<[1], [1], [0], [0], [0, 0, 1, 0], [], []>} : vector<16x3072xf32>, vector<4x3072xf32>, vector<16x4xf32> -> vector<16x4xf32>
    %c0_4 = arith.constant 0 : index
    %c0_5 = arith.constant 0 : index
    %4 = vector.load %arg4[%c0_4, %c0_5] : memref<4x128xf32, #tpu.memory_space<vmem>>, vector<4x128xf32>
    %cst_6 = arith.constant dense<0.000000e+00> : vector<16x128xf32>
    %5 = tpu.matmul %3, %4, %cst_6 {dimension_numbers = #tpu.dot_dimension_numbers<[1], [0], [0], [1], [0, 0, 1, 1], [], []>} : vector<16x4xf32>, vector<4x128xf32>, vector<16x128xf32> -> vector<16x128xf32>
    %c0_7 = arith.constant 0 : index
    %c0_8 = arith.constant 0 : index
    %c0_9 = arith.constant 0 : index
    %6 = vector.load %arg5[%c0_7, %c0_8, %c0_9] : memref<1x16x128xf32, #tpu.memory_space<vmem>>, vector<1x16x128xf32>
    %7 = vector.shape_cast %6 : vector<1x16x128xf32> to vector<16x128xf32>
    %8 = vector.shape_cast %5 : vector<16x128xf32> to vector<1x16x128xf32>
    tpu.vector_store %arg5[%c0_7, %c0_8, %c0_9], %8 {strides = array<i32>} : memref<1x16x128xf32, #tpu.memory_space<vmem>>, vector<1x16x128xf32>,
    return
  }
  func.func @transform_0(%arg0: i32, %arg1: i32) -> (i32, i32, i32) {
    %c0_i32 = arith.constant 0 : i32
    %c0_i32_0 = arith.constant 0 : i32
    return %arg0, %arg1, %c0_i32 : i32, i32, i32
  }
  func.func @transform_1(%arg0: i32, %arg1: i32) -> (i32, i32) {
    %c0_i32 = arith.constant 0 : i32
    %c0_i32_0 = arith.constant 0 : i32
    %c0_i32_1 = arith.constant 0 : i32
    return %c0_i32, %c0_i32_0 : i32, i32
  }
  func.func @transform_2(%arg0: i32, %arg1: i32) -> (i32, i32) {
    %c0_i32 = arith.constant 0 : i32
    %c0_i32_0 = arith.constant 0 : i32
    %c0_i32_1 = arith.constant 0 : i32
    return %c0_i32, %c0_i32_0 : i32, i32
  }
  func.func @transform_3(%arg0: i32, %arg1: i32) -> (i32, i32, i32) {
    %c0_i32 = arith.constant 0 : i32
    %c0_i32_0 = arith.constant 0 : i32
    return %arg0, %arg1, %c0_i32 : i32, i32, i32
  }
}

</mosaic_0001>

<llo_original>
// kernel: tpu_custom_call.1
$region0: #{tpu_custom_call.1}
  #allocation0 [shape = 'u32[]', space=smem, size = 0x4, offset = 0x4, fixed_abs, tag = 'smem constant byte address 0x4 - core index']
  #allocation1 [shape = 'u32[72,128]{1,0:T(1,128)}', space=vmem, size = 0x9000, scoped, tag = 'internal scratch']
  %s0 = inlined_call_operand.hbm [shape: f32[2,16,3072], index: 0, kind: input, shape index: {}]
  %s1 = inlined_call_operand.hbm [shape: f32[4,3072], index: 1, kind: input, shape index: {}]
  %s2 = inlined_call_operand.hbm [shape: f32[4,128], index: 2, kind: input, shape index: {}]
  %s3 = inlined_call_operand.hbm [shape: f32[2,16,128], index: 3, kind: output, shape index: {}]
  %s4 = sld [smem:[#allocation0]]
  $region57: #{tpu_custom_call.1} parent=0
    _
  %s6 = ssub.s32 1, %s4
  %s7 = scalar_select 0, %s6, %s4
  $region1: #{tpu_custom_call.1} parent=0
    #allocation2 [shape = 'u8[393216]{0}', space=vmem, size = 0x60000, scoped, tag = 'input window, operand 0']
    #allocation3 [shape = 's32[2]{0}', space=sflag, size = 0x8, scoped, tag = 'scoped memory for tpu_custom_call.1']
    #allocation4 [shape = 's32[2]{0}', space=sflag, size = 0x8, scoped, tag = 'scoped memory for tpu_custom_call.1']
    #allocation5 [shape = 'u8[49152]{0}', space=vmem, size = 0xc000, scoped, tag = 'input window, operand 1, single buffered']
    #allocation6 [shape = 's32[1]{0}', space=sflag, size = 0x4, scoped, tag = 'scoped memory for tpu_custom_call.1']
    #allocation7 [shape = 'u8[2048]{0}', space=vmem, size = 0x800, scoped, tag = 'input window, operand 2, single buffered']
    #allocation8 [shape = 'u8[16384]{0}', space=vmem, size = 0x4000, scoped, tag = 'output window, operand 0']
    %8 = vsyncpa [#allocation3], 0
    %s9 = scalar_lea.sflag [#allocation3], 1
    %10 = vsyncpa %s9, 0
    %11 = vsyncpa [#allocation6], 0
    %12 = vsyncpa [#allocation4], 0
    %s13 = scalar_lea.sflag [#allocation4], 1
    %14 = vsyncpa %s13, 0
    loop: start=0, step=1, limit=4
    $region2: #{tpu_custom_call.1} parent=1 // loop_pre_header
      _
    $region3: #{tpu_custom_call.1} parent=1 // loop_header
      %s16 = sphi 0, %s20
      %p17 = scmp.ge.s32.totalorder %s16, 4
      %s23 = sphi 0, %s35
      %s24 = sphi 0, %s31
      %s25 = sphi 0, %s23
      %s26 = sphi 0, %s24
      %s27 = sphi 0, %s25
      %s28 = sphi 0, %s26
      %s40 = sphi 0, %s42
      %s43 = sphi 0, %s40
      %s44 = sphi 0, %s43
      %s60 = sphi 0, %s44
      %s64 = sphi 0, %s64
      %s66 = sphi 0, %s64
      %s67 = sphi 0, %s66
      %s81 = sphi 0, %s67
      %s85 = sphi 0, %s85
      %s87 = sphi 0, %s85
      %s88 = sphi 0, %s87
      %s102 = sphi 0, %s88
      %s110 = sphi 0, %s112
      %s113 = sphi 0, %s110
      %s114 = sphi 0, %s113
      %s130 = sphi 0, %s114
    $region4: #{tpu_custom_call.1} parent=1 // loop_header_branch
      %19 = sbr.rel (%p17) target = $region8
    $region5: #{tpu_custom_call.1} parent=1 // loop_body
      %s21 = ssub.s32 %s16, 1
      %s22 = ssub.s32 %s16, 2
      %s29 = sadd.s32 1, %s24
      %p30 = scmp.ge.s32.totalorder %s29, 1
      %s31 = scalar_select %p30, 0, %s29
      %s32 = sadd.s32 1, %s23
      %s33 = scalar_select %p30, %s32, %s23
      %p34 = scmp.ge.s32.totalorder %s33, 2
      %s35 = scalar_select %p34, 0, %s33
      %s36 = ssub.s32 %s23, %s35
      %s37 = ssub.s32 %s24, %s31
      %s38 = sor.u32 %s36, %s37
      %p39 = scmp.eq.s32.totalorder %s38, 0
      %s41 = sadd.s32 %s40, 1
      %s42 = scalar_select %p39, %s40, %s41
      %p45 = pneg %p39
      %p46 = scmp.eq.s32.totalorder %s16, 1
      %p47 = por %p45, %p46
      %p48 = scmp.ne.s32.totalorder %s40, %s43
      %p49 = scmp.eq.s32.totalorder %s16, 0
      %p50 = por %p48, %p49
      %p51 = scmp.ne.s32.totalorder %s40, %s43
      %p52 = scmp.eq.s32.totalorder %s21, 1
      %p53 = por %p51, %p52
      %p54 = scmp.ne.s32.totalorder %s43, %s44
      %p55 = scmp.eq.s32.totalorder %s21, 0
      %p56 = por %p54, %p55
      %p57 = scmp.ne.s32.totalorder %s43, %s44
      %p58 = scmp.eq.s32.totalorder %s22, 1
      %p59 = por %p57, %p58
      %p61 = scmp.ne.s32.totalorder %s44, %s60
      %p62 = scmp.eq.s32.totalorder %s22, 0
      %p63 = por %p61, %p62
      %s65 = sadd.s32 %s64, 1
      %p68 = scmp.eq.s32.totalorder %s16, 1
      %p69 = scmp.ne.s32.totalorder %s64, %s66
      %p70 = scmp.eq.s32.totalorder %s16, 0
      %p71 = por %p69, %p70
      %p72 = scmp.ne.s32.totalorder %s64, %s66
      %p73 = scmp.eq.s32.totalorder %s21, 1
      %p74 = por %p72, %p73
      %p75 = scmp.ne.s32.totalorder %s66, %s67
      %p76 = scmp.eq.s32.totalorder %s21, 0
      %p77 = por %p75, %p76
      %p78 = scmp.ne.s32.totalorder %s66, %s67
      %p79 = scmp.eq.s32.totalorder %s22, 1
      %p80 = por %p78, %p79
      %p82 = scmp.ne.s32.totalorder %s67, %s81
      %p83 = scmp.eq.s32.totalorder %s22, 0
      %p84 = por %p82, %p83
      %s86 = sadd.s32 %s85, 1
      %p89 = scmp.eq.s32.totalorder %s16, 1
      %p90 = scmp.ne.s32.totalorder %s85, %s87
      %p91 = scmp.eq.s32.totalorder %s16, 0
      %p92 = por %p90, %p91
      %p93 = scmp.ne.s32.totalorder %s85, %s87
      %p94 = scmp.eq.s32.totalorder %s21, 1
      %p95 = por %p93, %p94
      %p96 = scmp.ne.s32.totalorder %s87, %s88
      %p97 = scmp.eq.s32.totalorder %s21, 0
      %p98 = por %p96, %p97
      %p99 = scmp.ne.s32.totalorder %s87, %s88
      %p100 = scmp.eq.s32.totalorder %s22, 1
      %p101 = por %p99, %p100
      %p103 = scmp.ne.s32.totalorder %s88, %s102
      %p104 = scmp.eq.s32.totalorder %s22, 0
      %p105 = por %p103, %p104
      %s106 = ssub.s32 %s23, %s35
      %s107 = ssub.s32 %s24, %s31
      %s108 = sor.u32 %s106, %s107
      %p109 = scmp.eq.s32.totalorder %s108, 0
      %s111 = sadd.s32 %s110, 1
      %s112 = scalar_select %p109, %s110, %s111
      %p115 = pneg %p109
      %p116 = scmp.eq.s32.totalorder %s16, 1
      %p117 = por %p115, %p116
      %p118 = scmp.ne.s32.totalorder %s110, %s113
      %p119 = scmp.eq.s32.totalorder %s16, 0
      %p120 = por %p118, %p119
      %p121 = scmp.ne.s32.totalorder %s110, %s113
      %p122 = scmp.eq.s32.totalorder %s21, 1
      %p123 = por %p121, %p122
      %p124 = scmp.ne.s32.totalorder %s113, %s114
      %p125 = scmp.eq.s32.totalorder %s21, 0
      %p126 = por %p124, %p125
      %p127 = scmp.ne.s32.totalorder %s113, %s114
      %p128 = scmp.eq.s32.totalorder %s22, 1
      %p129 = por %p127, %p128
      %p131 = scmp.ne.s32.totalorder %s114, %s130
      %p132 = scmp.eq.s32.totalorder %s22, 0
      %p133 = por %p131, %p132
      %p134 = scmp.le.s32.totalorder 1, %s16
      %p135 = scmp.lt.s32.totalorder %s16, 3
      %p136 = pnand %p134, %p135
      %p137 = pneg %p136
      // Predicated region
      $region9: #{tpu_custom_call.1} parent=5 // pred_check
        _
      $region10: #{tpu_custom_call.1} parent=5 // pred_check_branch
        %139 = sbr.rel (%p136) target = $region12
      $region11: #{tpu_custom_call.1} parent=5 // pred_region
        %s140 = ssub.s32 %s16, 1
        // Predicated region
        $region13: #{tpu_custom_call.1} parent=11 // pred_check
          %p141 = pneg %p77
        $region14: #{tpu_custom_call.1} parent=11 // pred_check_branch
          %143 = sbr.rel (%p141) target = $region16
        $region15: #{tpu_custom_call.1} parent=11 // pred_region
          %145 = vsyncadd [#allocation6], 0
          %s147 = sshll.u32 %s1, 4
          %s148 = int_to_ptr.hbm [resolvable:$true] %s147
          %s149 = sshll.u32 [#allocation5], 4
          %s150 = int_to_ptr.vmem [resolvable:$true] %s149
          %152 = dma.hbm_to_vmem [thread:$0]  %s148, 1536, %s150, [#allocation6]
        $region16: #{tpu_custom_call.1} parent=11 // pred_fallthru
          _
        // Predicated region
        $region17: #{tpu_custom_call.1} parent=11 // pred_check
          %p153 = pneg %p98
        $region18: #{tpu_custom_call.1} parent=11 // pred_check_branch
          %155 = sbr.rel (%p153) target = $region20
        $region19: #{tpu_custom_call.1} parent=11 // pred_region
          %157 = vsyncadd [#allocation6], 0
          %s159 = sshll.u32 %s2, 4
          %s160 = int_to_ptr.hbm [resolvable:$true] %s159
          %s161 = sshll.u32 [#allocation7], 4
          %s162 = int_to_ptr.vmem [resolvable:$true] %s161
          %164 = dma.hbm_to_vmem [thread:$0]  %s160, 64, %s162, [#allocation6]
        $region20: #{tpu_custom_call.1} parent=11 // pred_fallthru
          _
      $region12: #{tpu_custom_call.1} parent=5 // pred_fallthru
        _
      %p165 = scmp.lt.s32.totalorder %s16, 2
      // Predicated region
      $region21: #{tpu_custom_call.1} parent=5 // pred_check
        %p166 = pneg %p165
      $region22: #{tpu_custom_call.1} parent=5 // pred_check_branch
        %168 = sbr.rel (%p166) target = $region24
      $region23: #{tpu_custom_call.1} parent=5 // pred_region
        // Predicated region
        $region25: #{tpu_custom_call.1} parent=23 // pred_check
          %p169 = pneg %p50
        $region26: #{tpu_custom_call.1} parent=23 // pred_check_branch
          %171 = sbr.rel (%p169) target = $region28
        $region27: #{tpu_custom_call.1} parent=23 // pred_region
          %s172 = sand.u32 %s40, 1
          %s173 = scalar_lea.sflag [#allocation3], %s172
          %s174 = sand.u32 %s40, 1
          %s175 = smul.addr %s174, 384
          %s176 = scalar_lea.vmem [#allocation2], %s175
          %s177 = smul.u32 2, %s24
          %179 = vsyncadd %s173, 0
          %s180 = smul.addr %s177, 24
          %s181 = smul.addr %s23, 48
          %s182 = sadd.s32 %s180, %s181
          %s183 = smul.addr %s182, 8
          %s184 = scalar_lea.hbm %s0, %s183
          %s185 = sshll.u32 %s184, 4
          %s186 = int_to_ptr.hbm [resolvable:$true] %s185
          %s187 = sshll.u32 %s176, 4
          %s188 = int_to_ptr.vmem [resolvable:$true] %s187
          %193 = dma.hbm_to_vmem [thread:$0]  %s186, 6144, %s188, %s173, 3072, 3072, 192
        $region28: #{tpu_custom_call.1} parent=23 // pred_fallthru
          _
      $region24: #{tpu_custom_call.1} parent=5 // pred_fallthru
        _
      %p194 = scmp.le.s32.totalorder 1, %s16
      %p195 = scmp.lt.s32.totalorder %s16, 3
      %p196 = pnand %p194, %p195
      %p197 = pneg %p196
      // Predicated region
      $region29: #{tpu_custom_call.1} parent=5 // pred_check
        _
      $region30: #{tpu_custom_call.1} parent=5 // pred_check_branch
        %199 = sbr.rel (%p196) target = $region32
      $region31: #{tpu_custom_call.1} parent=5 // pred_region
        %s200 = ssub.s32 %s16, 1
        %s201 = sand.u32 %s43, 1
        %s202 = scalar_lea.sflag [#allocation3], %s201
        %s203 = sand.u32 %s43, 1
        %s204 = smul.addr %s203, 384
        %s205 = scalar_lea.vmem [#allocation2], %s204
        // Predicated region
        $region33: #{tpu_custom_call.1} parent=31 // pred_check
          %p206 = pneg %p56
        $region34: #{tpu_custom_call.1} parent=31 // pred_check_branch
          %208 = sbr.rel (%p206) target = $region36
        $region35: #{tpu_custom_call.1} parent=31 // pred_region
          %210 = dma.done %s202, 6144
        $region36: #{tpu_custom_call.1} parent=31 // pred_fallthru
          _
        // Predicated region
        $region37: #{tpu_custom_call.1} parent=31 // pred_check
          %p211 = pneg %p77
        $region38: #{tpu_custom_call.1} parent=31 // pred_check_branch
          %213 = sbr.rel (%p211) target = $region40
        $region39: #{tpu_custom_call.1} parent=31 // pred_region
          %215 = dma.done [#allocation6], 1536
        $region40: #{tpu_custom_call.1} parent=31 // pred_fallthru
          _
        // Predicated region
        $region41: #{tpu_custom_call.1} parent=31 // pred_check
          %p216 = pneg %p98
        $region42: #{tpu_custom_call.1} parent=31 // pred_check_branch
          %218 = sbr.rel (%p216) target = $region44
        $region43: #{tpu_custom_call.1} parent=31 // pred_region
          %220 = dma.done [#allocation6], 64
        $region44: #{tpu_custom_call.1} parent=31 // pred_fallthru
          _
        %s221 = sand.u32 %s43, 1
        %s222 = scalar_lea.sflag [#allocation3], %s221
        %s223 = sand.u32 %s43, 1
        %s224 = smul.addr %s223, 384
        %s225 = scalar_lea.vmem [#allocation2], %s224
        %p226 = pneg %p56
        %p227 = pneg %p53
        %p228 = pneg %p77
        %p229 = pneg %p74
        %p230 = pneg %p98
        %p231 = pneg %p95
        %p232 = pneg %p126
        %p233 = pneg %p123
        %s234 = sand.u32 %s113, 1
        %s235 = scalar_lea.sflag [#allocation4], %s234
        %s236 = sand.u32 %s113, 1
        %s237 = smul.addr %s236, 16
        %s238 = scalar_lea.vmem [#allocation8], %s237
        %s239 = smul.u32 2, %s26
        %s240 = smul.u32 2, %s26
        %v241 = vld [vmem:[%s205] sm:$0xff]
        %v242 = vld [vmem:[%s205 + $0x8] sm:$0xff]
        %v243 = vld [vmem:[%s205 + $0x10] sm:$0xff]
        %v244 = vld [vmem:[%s205 + $0x18] sm:$0xff]
        %v245 = vld [vmem:[%s205 + $0x20] sm:$0xff]
        %v246 = vld [vmem:[%s205 + $0x28] sm:$0xff]
        %v247 = vld [vmem:[%s205 + $0x30] sm:$0xff]
        %v248 = vld [vmem:[%s205 + $0x38] sm:$0xff]
        %v249 = vld [vmem:[%s205 + $0x40] sm:$0xff]
        %v250 = vld [vmem:[%s205 + $0x48] sm:$0xff]
        %v251 = vld [vmem:[%s205 + $0x50] sm:$0xff]
        %v252 = vld [vmem:[%s205 + $0x58] sm:$0xff]
        %v253 = vld [vmem:[%s205 + $0x60] sm:$0xff]
        %v254 = vld [vmem:[%s205 + $0x68] sm:$0xff]
        %v255 = vld [vmem:[%s205 + $0x70] sm:$0xff]
        %v256 = vld [vmem:[%s205 + $0x78] sm:$0xff]
        %v257 = vld [vmem:[%s205 + $0x80] sm:$0xff]
        %v258 = vld [vmem:[%s205 + $0x88] sm:$0xff]
        %v259 = vld [vmem:[%s205 + $0x90] sm:$0xff]
        %v260 = vld [vmem:[%s205 + $0x98] sm:$0xff]
        %v261 = vld [vmem:[%s205 + $0xa0] sm:$0xff]
        %v262 = vld [vmem:[%s205 + $0xa8] sm:$0xff]
        %v263 = vld [vmem:[%s205 + $0xb0] sm:$0xff]
        %v264 = vld [vmem:[%s205 + $0xb8] sm:$0xff]
        %v265 = vld [vmem:[%s205 + $0xc0] sm:$0xff]
        %v266 = vld [vmem:[%s205 + $0xc8] sm:$0xff]
        %v267 = vld [vmem:[%s205 + $0xd0] sm:$0xff]
        %v268 = vld [vmem:[%s205 + $0xd8] sm:$0xff]
        %v269 = vld [vmem:[%s205 + $0xe0] sm:$0xff]
        %v270 = vld [vmem:[%s205 + $0xe8] sm:$0xff]
        %v271 = vld [vmem:[%s205 + $0xf0] sm:$0xff]
        %v272 = vld [vmem:[%s205 + $0xf8] sm:$0xff]
        %v273 = vld [vmem:[%s205 + $0x100] sm:$0xff]
        %v274 = vld [vmem:[%s205 + $0x108] sm:$0xff]
        %v275 = vld [vmem:[%s205 + $0x110] sm:$0xff]
        %v276 = vld [vmem:[%s205 + $0x118] sm:$0xff]
        %v277 = vld [vmem:[%s205 + $0x120] sm:$0xff]
        %v278 = vld [vmem:[%s205 + $0x128] sm:$0xff]
        %v279 = vld [vmem:[%s205 + $0x130] sm:$0xff]
        %v280 = vld [vmem:[%s205 + $0x138] sm:$0xff]
        %v281 = vld [vmem:[%s205 + $0x140] sm:$0xff]
        %v282 = vld [vmem:[%s205 + $0x148] sm:$0xff]
        %v283 = vld [vmem:[%s205 + $0x150] sm:$0xff]
        %v284 = vld [vmem:[%s205 + $0x158] sm:$0xff]
        %v285 = vld [vmem:[%s205 + $0x160] sm:$0xff]
        %v286 = vld [vmem:[%s205 + $0x168] sm:$0xff]
        %v287 = vld [vmem:[%s205 + $0x170] sm:$0xff]
        %v288 = vld [vmem:[%s205 + $0x178] sm:$0xff]
        %v289 = vld [vmem:[#allocation5] sm:$0xff]
        %v290 = vld [vmem:[#allocation5 + $0x8] sm:$0xff]
        %v291 = vld [vmem:[#allocation5 + $0x10] sm:$0xff]
        %v292 = vld [vmem:[#allocation5 + $0x18] sm:$0xff]
        %v293 = vld [vmem:[#allocation5 + $0x20] sm:$0xff]
        %v294 = vld [vmem:[#allocation5 + $0x28] sm:$0xff]
        %v295 = vld [vmem:[#allocation5 + $0x30] sm:$0xff]
        %v296 = vld [vmem:[#allocation5 + $0x38] sm:$0xff]
        %v297 = vld [vmem:[#allocation5 + $0x40] sm:$0xff]
        %v298 = vld [vmem:[#allocation5 + $0x48] sm:$0xff]
        %v299 = vld [vmem:[#allocation5 + $0x50] sm:$0xff]
        %v300 = vld [vmem:[#allocation5 + $0x58] sm:$0xff]
        %313 = vst [vmem:[#allocation1] ss:$2 sm:$0xff] %v289
        %s314 = scalar_lea.vmem [#allocation1], 16
        %315 = vst [vmem:[%s314] ss:$2 sm:$0xff] %v290
        %s316 = scalar_lea.vmem [#allocation1], 32
        %317 = vst [vmem:[%s316] ss:$2 sm:$0xff] %v291
        %s318 = scalar_lea.vmem [#allocation1], 48
        %319 = vst [vmem:[%s318] ss:$2 sm:$0xff] %v292
        %v320 = vld.sshfl [vmem:[#allocation1] sm:$0xff pattern:$0x75316420]
        %v321 = vld.sshfl [vmem:[#allocation1 + $0x8] sm:$0xff pattern:$0x75316420]
        %v322 = vld.sshfl [vmem:[#allocation1 + $0x10] sm:$0xff pattern:$0x75316420]
        %v323 = vld.sshfl [vmem:[#allocation1 + $0x18] sm:$0xff pattern:$0x75316420]
        %v324 = vld.sshfl [vmem:[#allocation1 + $0x20] sm:$0xff pattern:$0x75316420]
        %v325 = vld.sshfl [vmem:[#allocation1 + $0x28] sm:$0xff pattern:$0x75316420]
        %v326 = vld.sshfl [vmem:[#allocation1 + $0x30] sm:$0xff pattern:$0x75316420]
        %v327 = vld.sshfl [vmem:[#allocation1 + $0x38] sm:$0xff pattern:$0x75316420]
        %328 = vst [vmem:[#allocation1] ss:$2 sm:$0xff] %v293
        %329 = vst [vmem:[%s314] ss:$2 sm:$0xff] %v294
        %330 = vst [vmem:[%s316] ss:$2 sm:$0xff] %v295
        %331 = vst [vmem:[%s318] ss:$2 sm:$0xff] %v296
        %v332 = vld.sshfl [vmem:[#allocation1] sm:$0xff pattern:$0x75316420]
        %v333 = vld.sshfl [vmem:[#allocation1 + $0x8] sm:$0xff pattern:$0x75316420]
        %v334 = vld.sshfl [vmem:[#allocation1 + $0x10] sm:$0xff pattern:$0x75316420]
        %v335 = vld.sshfl [vmem:[#allocation1 + $0x18] sm:$0xff pattern:$0x75316420]
        %v336 = vld.sshfl [vmem:[#allocation1 + $0x20] sm:$0xff pattern:$0x75316420]
        %v337 = vld.sshfl [vmem:[#allocation1 + $0x28] sm:$0xff pattern:$0x75316420]
        %v338 = vld.sshfl [vmem:[#allocation1 + $0x30] sm:$0xff pattern:$0x75316420]
        %v339 = vld.sshfl [vmem:[#allocation1 + $0x38] sm:$0xff pattern:$0x75316420]
        %340 = vst [vmem:[#allocation1] ss:$2 sm:$0xff] %v297
        %341 = vst [vmem:[%s314] ss:$2 sm:$0xff] %v298
        %342 = vst [vmem:[%s316] ss:$2 sm:$0xff] %v299
        %343 = vst [vmem:[%s318] ss:$2 sm:$0xff] %v300
        %v344 = vld.sshfl [vmem:[#allocation1] sm:$0xff pattern:$0x75316420]
        %v345 = vld.sshfl [vmem:[#allocation1 + $0x8] sm:$0xff pattern:$0x75316420]
        %v346 = vld.sshfl [vmem:[#allocation1 + $0x10] sm:$0xff pattern:$0x75316420]
        %v347 = vld.sshfl [vmem:[#allocation1 + $0x18] sm:$0xff pattern:$0x75316420]
        %v348 = vld.sshfl [vmem:[#allocation1 + $0x20] sm:$0xff pattern:$0x75316420]
        %v349 = vld.sshfl [vmem:[#allocation1 + $0x28] sm:$0xff pattern:$0x75316420]
        %v350 = vld.sshfl [vmem:[#allocation1 + $0x30] sm:$0xff pattern:$0x75316420]
        %v351 = vld.sshfl [vmem:[#allocation1 + $0x38] sm:$0xff pattern:$0x75316420]
        %376 = vmatpush.xpose.msra.mxu0 0.0
        %377 = vmatpush.xpose.msra.mxu0 0.0
        %378 = vmatpush.xpose.msra.mxu0 0.0
        %379 = vmatpush.xpose.msra.mxu0 0.0
        %380 = vmatpush.xpose.msra.mxu0 0.0
        %381 = vmatpush.xpose.msra.mxu0 0.0
        %382 = vmatpush.xpose.msra.mxu0 0.0
        %383 = vmatpush.xpose.msra.mxu0 0.0
        %384 = vmatpush.xpose.msra.mxu0 0.0
        %385 = vmatpush.xpose.msra.mxu0 0.0
        %386 = vmatpush.xpose.msra.mxu0 0.0
        %387 = vmatpush.xpose.msra.mxu0 0.0
        %388 = vmatpush.xpose.msra.mxu0 0.0
        %389 = vmatpush.xpose.msra.mxu0 0.0
        %390 = vmatpush.xpose.msra.mxu0 0.0
        %391 = vmatpush.xpose.msra.mxu0 %v320
        %392 = vmatmul.f32.gmra.mxu0 %v241
        %v393 = vpop.f32.mrf.mxu0
        %v394 = vadd.f32 0.0, %v393
        %395 = vmatmul.f32.gmra.mxu0 %v265
        %v396 = vpop.f32.mrf.mxu0
        %v397 = vadd.f32 0.0, %v396
        %398 = vdwg.mxu0
        %399 = vmatpush.xpose.msra.mxu0 0.0
        %400 = vmatpush.xpose.msra.mxu0 0.0
        %401 = vmatpush.xpose.msra.mxu0 0.0
        %402 = vmatpush.xpose.msra.mxu0 0.0
        %403 = vmatpush.xpose.msra.mxu0 0.0
        %404 = vmatpush.xpose.msra.mxu0 0.0
        %405 = vmatpush.xpose.msra.mxu0 0.0
        %406 = vmatpush.xpose.msra.mxu0 0.0
        %407 = vmatpush.xpose.msra.mxu0 0.0
        %408 = vmatpush.xpose.msra.mxu0 0.0
        %409 = vmatpush.xpose.msra.mxu0 0.0
        %410 = vmatpush.xpose.msra.mxu0 0.0
        %411 = vmatpush.xpose.msra.mxu0 0.0
        %412 = vmatpush.xpose.msra.mxu0 0.0
        %413 = vmatpush.xpose.msra.mxu0 0.0
        %414 = vmatpush.xpose.msra.mxu0 %v321
        %415 = vmatmul.f32.gmra.mxu0 %v242
        %v416 = vpop.f32.mrf.mxu0
        %v417 = vadd.f32 %v394, %v416
        %418 = vmatmul.f32.gmra.mxu0 %v266
        %v419 = vpop.f32.mrf.mxu0
        %v420 = vadd.f32 %v397, %v419
        %421 = vdwg.mxu0
        %422 = vmatpush.xpose.msra.mxu0 0.0
        %423 = vmatpush.xpose.msra.mxu0 0.0
        %424 = vmatpush.xpose.msra.mxu0 0.0
        %425 = vmatpush.xpose.msra.mxu0 0.0
        %426 = vmatpush.xpose.msra.mxu0 0.0
        %427 = vmatpush.xpose.msra.mxu0 0.0
        %428 = vmatpush.xpose.msra.mxu0 0.0
        %429 = vmatpush.xpose.msra.mxu0 0.0
        %430 = vmatpush.xpose.msra.mxu0 0.0
        %431 = vmatpush.xpose.msra.mxu0 0.0
        %432 = vmatpush.xpose.msra.mxu0 0.0
        %433 = vmatpush.xpose.msra.mxu0 0.0
        %434 = vmatpush.xpose.msra.mxu0 0.0
        %435 = vmatpush.xpose.msra.mxu0 0.0
        %436 = vmatpush.xpose.msra.mxu0 0.0
        %437 = vmatpush.xpose.msra.mxu0 %v322
        %438 = vmatmul.f32.gmra.mxu0 %v243
        %v439 = vpop.f32.mrf.mxu0
        %v440 = vadd.f32 %v417, %v439
        %441 = vmatmul.f32.gmra.mxu0 %v267
        %v442 = vpop.f32.mrf.mxu0
        %v443 = vadd.f32 %v420, %v442
        %444 = vdwg.mxu0
        %445 = vmatpush.xpose.msra.mxu0 0.0
        %446 = vmatpush.xpose.msra.mxu0 0.0
        %447 = vmatpush.xpose.msra.mxu0 0.0
        %448 = vmatpush.xpose.msra.mxu0 0.0
        %449 = vmatpush.xpose.msra.mxu0 0.0
        %450 = vmatpush.xpose.msra.mxu0 0.0
        %451 = vmatpush.xpose.msra.mxu0 0.0
        %452 = vmatpush.xpose.msra.mxu0 0.0
        %453 = vmatpush.xpose.msra.mxu0 0.0
        %454 = vmatpush.xpose.msra.mxu0 0.0
        %455 = vmatpush.xpose.msra.mxu0 0.0
        %456 = vmatpush.xpose.msra.mxu0 0.0
        %457 = vmatpush.xpose.msra.mxu0 0.0
        %458 = vmatpush.xpose.msra.mxu0 0.0
        %459 = vmatpush.xpose.msra.mxu0 0.0
        %460 = vmatpush.xpose.msra.mxu0 %v323
        %461 = vmatmul.f32.gmra.mxu0 %v244
        %v462 = vpop.f32.mrf.mxu0
        %v463 = vadd.f32 %v440, %v462
        %464 = vmatmul.f32.gmra.mxu0 %v268
        %v465 = vpop.f32.mrf.mxu0
        %v466 = vadd.f32 %v443, %v465
        %467 = vdwg.mxu0
        %468 = vmatpush.xpose.msra.mxu0 0.0
        %469 = vmatpush.xpose.msra.mxu0 0.0
        %470 = vmatpush.xpose.msra.mxu0 0.0
        %471 = vmatpush.xpose.msra.mxu0 0.0
        %472 = vmatpush.xpose.msra.mxu0 0.0
        %473 = vmatpush.xpose.msra.mxu0 0.0
        %474 = vmatpush.xpose.msra.mxu0 0.0
        %475 = vmatpush.xpose.msra.mxu0 0.0
        %476 = vmatpush.xpose.msra.mxu0 0.0
        %477 = vmatpush.xpose.msra.mxu0 0.0
        %478 = vmatpush.xpose.msra.mxu0 0.0
        %479 = vmatpush.xpose.msra.mxu0 0.0
        %480 = vmatpush.xpose.msra.mxu0 0.0
        %481 = vmatpush.xpose.msra.mxu0 0.0
        %482 = vmatpush.xpose.msra.mxu0 0.0
        %483 = vmatpush.xpose.msra.mxu0 %v324
        %484 = vmatmul.f32.gmra.mxu0 %v245
        %v485 = vpop.f32.mrf.mxu0
        %v486 = vadd.f32 %v463, %v485
        %487 = vmatmul.f32.gmra.mxu0 %v269
        %v488 = vpop.f32.mrf.mxu0
        %v489 = vadd.f32 %v466, %v488
        %490 = vdwg.mxu0
        %491 = vmatpush.xpose.msra.mxu0 0.0
        %492 = vmatpush.xpose.msra.mxu0 0.0
        %493 = vmatpush.xpose.msra.mxu0 0.0
        %494 = vmatpush.xpose.msra.mxu0 0.0
        %495 = vmatpush.xpose.msra.mxu0 0.0
        %496 = vmatpush.xpose.msra.mxu0 0.0
        %497 = vmatpush.xpose.msra.mxu0 0.0
        %498 = vmatpush.xpose.msra.mxu0 0.0
        %499 = vmatpush.xpose.msra.mxu0 0.0
        %500 = vmatpush.xpose.msra.mxu0 0.0
        %501 = vmatpush.xpose.msra.mxu0 0.0
        %502 = vmatpush.xpose.msra.mxu0 0.0
        %503 = vmatpush.xpose.msra.mxu0 0.0
        %504 = vmatpush.xpose.msra.mxu0 0.0
        %505 = vmatpush.xpose.msra.mxu0 0.0
        %506 = vmatpush.xpose.msra.mxu0 %v325
        %507 = vmatmul.f32.gmra.mxu0 %v246
        %v508 = vpop.f32.mrf.mxu0
        %v509 = vadd.f32 %v486, %v508
        %510 = vmatmul.f32.gmra.mxu0 %v270
        %v511 = vpop.f32.mrf.mxu0
        %v512 = vadd.f32 %v489, %v511
        %513 = vdwg.mxu0
        %514 = vmatpush.xpose.msra.mxu0 0.0
        %515 = vmatpush.xpose.msra.mxu0 0.0
        %516 = vmatpush.xpose.msra.mxu0 0.0
        %517 = vmatpush.xpose.msra.mxu0 0.0
        %518 = vmatpush.xpose.msra.mxu0 0.0
        %519 = vmatpush.xpose.msra.mxu0 0.0
        %520 = vmatpush.xpose.msra.mxu0 0.0
        %521 = vmatpush.xpose.msra.mxu0 0.0
        %522 = vmatpush.xpose.msra.mxu0 0.0
        %523 = vmatpush.xpose.msra.mxu0 0.0
        %524 = vmatpush.xpose.msra.mxu0 0.0
        %525 = vmatpush.xpose.msra.mxu0 0.0
        %526 = vmatpush.xpose.msra.mxu0 0.0
        %527 = vmatpush.xpose.msra.mxu0 0.0
        %528 = vmatpush.xpose.msra.mxu0 0.0
        %529 = vmatpush.xpose.msra.mxu0 %v326
        %530 = vmatmul.f32.gmra.mxu0 %v247
        %v531 = vpop.f32.mrf.mxu0
        %v532 = vadd.f32 %v509, %v531
        %533 = vmatmul.f32.gmra.mxu0 %v271
        %v534 = vpop.f32.mrf.mxu0
        %v535 = vadd.f32 %v512, %v534
        %536 = vdwg.mxu0
        %537 = vmatpush.xpose.msra.mxu0 0.0
        %538 = vmatpush.xpose.msra.mxu0 0.0
        %539 = vmatpush.xpose.msra.mxu0 0.0
        %540 = vmatpush.xpose.msra.mxu0 0.0
        %541 = vmatpush.xpose.msra.mxu0 0.0
        %542 = vmatpush.xpose.msra.mxu0 0.0
        %543 = vmatpush.xpose.msra.mxu0 0.0
        %544 = vmatpush.xpose.msra.mxu0 0.0
        %545 = vmatpush.xpose.msra.mxu0 0.0
        %546 = vmatpush.xpose.msra.mxu0 0.0
        %547 = vmatpush.xpose.msra.mxu0 0.0
        %548 = vmatpush.xpose.msra.mxu0 0.0
        %549 = vmatpush.xpose.msra.mxu0 0.0
        %550 = vmatpush.xpose.msra.mxu0 0.0
        %551 = vmatpush.xpose.msra.mxu0 0.0
        %552 = vmatpush.xpose.msra.mxu0 %v327
        %553 = vmatmul.f32.gmra.mxu0 %v248
        %v554 = vpop.f32.mrf.mxu0
        %v555 = vadd.f32 %v532, %v554
        %556 = vmatmul.f32.gmra.mxu0 %v272
        %v557 = vpop.f32.mrf.mxu0
        %v558 = vadd.f32 %v535, %v557
        %559 = vdwg.mxu0
        %560 = vmatpush.xpose.msra.mxu0 0.0
        %561 = vmatpush.xpose.msra.mxu0 0.0
        %562 = vmatpush.xpose.msra.mxu0 0.0
        %563 = vmatpush.xpose.msra.mxu0 0.0
        %564 = vmatpush.xpose.msra.mxu0 0.0
        %565 = vmatpush.xpose.msra.mxu0 0.0
        %566 = vmatpush.xpose.msra.mxu0 0.0
        %567 = vmatpush.xpose.msra.mxu0 0.0
        %568 = vmatpush.xpose.msra.mxu0 0.0
        %569 = vmatpush.xpose.msra.mxu0 0.0
        %570 = vmatpush.xpose.msra.mxu0 0.0
        %571 = vmatpush.xpose.msra.mxu0 0.0
        %572 = vmatpush.xpose.msra.mxu0 0.0
        %573 = vmatpush.xpose.msra.mxu0 0.0
        %574 = vmatpush.xpose.msra.mxu0 0.0
        %575 = vmatpush.xpose.msra.mxu0 %v332
        %576 = vmatmul.f32.gmra.mxu0 %v249
        %v577 = vpop.f32.mrf.mxu0
        %v578 = vadd.f32 %v555, %v577
        %579 = vmatmul.f32.gmra.mxu0 %v273
        %v580 = vpop.f32.mrf.mxu0
        %v581 = vadd.f32 %v558, %v580
        %582 = vdwg.mxu0
        %583 = vmatpush.xpose.msra.mxu0 0.0
        %584 = vmatpush.xpose.msra.mxu0 0.0
        %585 = vmatpush.xpose.msra.mxu0 0.0
        %586 = vmatpush.xpose.msra.mxu0 0.0
        %587 = vmatpush.xpose.msra.mxu0 0.0
        %588 = vmatpush.xpose.msra.mxu0 0.0
        %589 = vmatpush.xpose.msra.mxu0 0.0
        %590 = vmatpush.xpose.msra.mxu0 0.0
        %591 = vmatpush.xpose.msra.mxu0 0.0
        %592 = vmatpush.xpose.msra.mxu0 0.0
        %593 = vmatpush.xpose.msra.mxu0 0.0
        %594 = vmatpush.xpose.msra.mxu0 0.0
        %595 = vmatpush.xpose.msra.mxu0 0.0
        %596 = vmatpush.xpose.msra.mxu0 0.0
        %597 = vmatpush.xpose.msra.mxu0 0.0
        %598 = vmatpush.xpose.msra.mxu0 %v333
        %599 = vmatmul.f32.gmra.mxu0 %v250
        %v600 = vpop.f32.mrf.mxu0
        %v601 = vadd.f32 %v578, %v600
        %602 = vmatmul.f32.gmra.mxu0 %v274
        %v603 = vpop.f32.mrf.mxu0
        %v604 = vadd.f32 %v581, %v603
        %605 = vdwg.mxu0
        %606 = vmatpush.xpose.msra.mxu0 0.0
        %607 = vmatpush.xpose.msra.mxu0 0.0
        %608 = vmatpush.xpose.msra.mxu0 0.0
        %609 = vmatpush.xpose.msra.mxu0 0.0
        %610 = vmatpush.xpose.msra.mxu0 0.0
        %611 = vmatpush.xpose.msra.mxu0 0.0
        %612 = vmatpush.xpose.msra.mxu0 0.0
        %613 = vmatpush.xpose.msra.mxu0 0.0
        %614 = vmatpush.xpose.msra.mxu0 0.0
        %615 = vmatpush.xpose.msra.mxu0 0.0
        %616 = vmatpush.xpose.msra.mxu0 0.0
        %617 = vmatpush.xpose.msra.mxu0 0.0
        %618 = vmatpush.xpose.msra.mxu0 0.0
        %619 = vmatpush.xpose.msra.mxu0 0.0
        %620 = vmatpush.xpose.msra.mxu0 0.0
        %621 = vmatpush.xpose.msra.mxu0 %v334
        %622 = vmatmul.f32.gmra.mxu0 %v251
        %v623 = vpop.f32.mrf.mxu0
        %v624 = vadd.f32 %v601, %v623
        %625 = vmatmul.f32.gmra.mxu0 %v275
        %v626 = vpop.f32.mrf.mxu0
        %v627 = vadd.f32 %v604, %v626
        %628 = vdwg.mxu0
        %629 = vmatpush.xpose.msra.mxu0 0.0
        %630 = vmatpush.xpose.msra.mxu0 0.0
        %631 = vmatpush.xpose.msra.mxu0 0.0
        %632 = vmatpush.xpose.msra.mxu0 0.0
        %633 = vmatpush.xpose.msra.mxu0 0.0
        %634 = vmatpush.xpose.msra.mxu0 0.0
        %635 = vmatpush.xpose.msra.mxu0 0.0
        %636 = vmatpush.xpose.msra.mxu0 0.0
        %637 = vmatpush.xpose.msra.mxu0 0.0
        %638 = vmatpush.xpose.msra.mxu0 0.0
        %639 = vmatpush.xpose.msra.mxu0 0.0
        %640 = vmatpush.xpose.msra.mxu0 0.0
        %641 = vmatpush.xpose.msra.mxu0 0.0
        %642 = vmatpush.xpose.msra.mxu0 0.0
        %643 = vmatpush.xpose.msra.mxu0 0.0
        %644 = vmatpush.xpose.msra.mxu0 %v335
        %645 = vmatmul.f32.gmra.mxu0 %v252
        %v646 = vpop.f32.mrf.mxu0
        %v647 = vadd.f32 %v624, %v646
        %648 = vmatmul.f32.gmra.mxu0 %v276
        %v649 = vpop.f32.mrf.mxu0
        %v650 = vadd.f32 %v627, %v649
        %651 = vdwg.mxu0
        %652 = vmatpush.xpose.msra.mxu0 0.0
        %653 = vmatpush.xpose.msra.mxu0 0.0
        %654 = vmatpush.xpose.msra.mxu0 0.0
        %655 = vmatpush.xpose.msra.mxu0 0.0
        %656 = vmatpush.xpose.msra.mxu0 0.0
        %657 = vmatpush.xpose.msra.mxu0 0.0
        %658 = vmatpush.xpose.msra.mxu0 0.0
        %659 = vmatpush.xpose.msra.mxu0 0.0
        %660 = vmatpush.xpose.msra.mxu0 0.0
        %661 = vmatpush.xpose.msra.mxu0 0.0
        %662 = vmatpush.xpose.msra.mxu0 0.0
        %663 = vmatpush.xpose.msra.mxu0 0.0
        %664 = vmatpush.xpose.msra.mxu0 0.0
        %665 = vmatpush.xpose.msra.mxu0 0.0
        %666 = vmatpush.xpose.msra.mxu0 0.0
        %667 = vmatpush.xpose.msra.mxu0 %v336
        %668 = vmatmul.f32.gmra.mxu0 %v253
        %v669 = vpop.f32.mrf.mxu0
        %v670 = vadd.f32 %v647, %v669
        %671 = vmatmul.f32.gmra.mxu0 %v277
        %v672 = vpop.f32.mrf.mxu0
        %v673 = vadd.f32 %v650, %v672
        %674 = vdwg.mxu0
        %675 = vmatpush.xpose.msra.mxu0 0.0
        %676 = vmatpush.xpose.msra.mxu0 0.0
        %677 = vmatpush.xpose.msra.mxu0 0.0
        %678 = vmatpush.xpose.msra.mxu0 0.0
        %679 = vmatpush.xpose.msra.mxu0 0.0
        %680 = vmatpush.xpose.msra.mxu0 0.0
        %681 = vmatpush.xpose.msra.mxu0 0.0
        %682 = vmatpush.xpose.msra.mxu0 0.0
        %683 = vmatpush.xpose.msra.mxu0 0.0
        %684 = vmatpush.xpose.msra.mxu0 0.0
        %685 = vmatpush.xpose.msra.mxu0 0.0
        %686 = vmatpush.xpose.msra.mxu0 0.0
        %687 = vmatpush.xpose.msra.mxu0 0.0
        %688 = vmatpush.xpose.msra.mxu0 0.0
        %689 = vmatpush.xpose.msra.mxu0 0.0
        %690 = vmatpush.xpose.msra.mxu0 %v337
        %691 = vmatmul.f32.gmra.mxu0 %v254
        %v692 = vpop.f32.mrf.mxu0
        %v693 = vadd.f32 %v670, %v692
        %694 = vmatmul.f32.gmra.mxu0 %v278
        %v695 = vpop.f32.mrf.mxu0
        %v696 = vadd.f32 %v673, %v695
        %697 = vdwg.mxu0
        %698 = vmatpush.xpose.msra.mxu0 0.0
        %699 = vmatpush.xpose.msra.mxu0 0.0
        %700 = vmatpush.xpose.msra.mxu0 0.0
        %701 = vmatpush.xpose.msra.mxu0 0.0
        %702 = vmatpush.xpose.msra.mxu0 0.0
        %703 = vmatpush.xpose.msra.mxu0 0.0
        %704 = vmatpush.xpose.msra.mxu0 0.0
        %705 = vmatpush.xpose.msra.mxu0 0.0
        %706 = vmatpush.xpose.msra.mxu0 0.0
        %707 = vmatpush.xpose.msra.mxu0 0.0
        %708 = vmatpush.xpose.msra.mxu0 0.0
        %709 = vmatpush.xpose.msra.mxu0 0.0
        %710 = vmatpush.xpose.msra.mxu0 0.0
        %711 = vmatpush.xpose.msra.mxu0 0.0
        %712 = vmatpush.xpose.msra.mxu0 0.0
        %713 = vmatpush.xpose.msra.mxu0 %v338
        %714 = vmatmul.f32.gmra.mxu0 %v255
        %v715 = vpop.f32.mrf.mxu0
        %v716 = vadd.f32 %v693, %v715
        %717 = vmatmul.f32.gmra.mxu0 %v279
        %v718 = vpop.f32.mrf.mxu0
        %v719 = vadd.f32 %v696, %v718
        %720 = vdwg.mxu0
        %721 = vmatpush.xpose.msra.mxu0 0.0
        %722 = vmatpush.xpose.msra.mxu0 0.0
        %723 = vmatpush.xpose.msra.mxu0 0.0
        %724 = vmatpush.xpose.msra.mxu0 0.0
        %725 = vmatpush.xpose.msra.mxu0 0.0
        %726 = vmatpush.xpose.msra.mxu0 0.0
        %727 = vmatpush.xpose.msra.mxu0 0.0
        %728 = vmatpush.xpose.msra.mxu0 0.0
        %729 = vmatpush.xpose.msra.mxu0 0.0
        %730 = vmatpush.xpose.msra.mxu0 0.0
        %731 = vmatpush.xpose.msra.mxu0 0.0
        %732 = vmatpush.xpose.msra.mxu0 0.0
        %733 = vmatpush.xpose.msra.mxu0 0.0
        %734 = vmatpush.xpose.msra.mxu0 0.0
        %735 = vmatpush.xpose.msra.mxu0 0.0
        %736 = vmatpush.xpose.msra.mxu0 %v339
        %737 = vmatmul.f32.gmra.mxu0 %v256
        %v738 = vpop.f32.mrf.mxu0
        %v739 = vadd.f32 %v716, %v738
        %740 = vmatmul.f32.gmra.mxu0 %v280
        %v741 = vpop.f32.mrf.mxu0
        %v742 = vadd.f32 %v719, %v741
        %743 = vdwg.mxu0
        %744 = vmatpush.xpose.msra.mxu0 0.0
        %745 = vmatpush.xpose.msra.mxu0 0.0
        %746 = vmatpush.xpose.msra.mxu0 0.0
        %747 = vmatpush.xpose.msra.mxu0 0.0
        %748 = vmatpush.xpose.msra.mxu0 0.0
        %749 = vmatpush.xpose.msra.mxu0 0.0
        %750 = vmatpush.xpose.msra.mxu0 0.0
        %751 = vmatpush.xpose.msra.mxu0 0.0
        %752 = vmatpush.xpose.msra.mxu0 0.0
        %753 = vmatpush.xpose.msra.mxu0 0.0
        %754 = vmatpush.xpose.msra.mxu0 0.0
        %755 = vmatpush.xpose.msra.mxu0 0.0
        %756 = vmatpush.xpose.msra.mxu0 0.0
        %757 = vmatpush.xpose.msra.mxu0 0.0
        %758 = vmatpush.xpose.msra.mxu0 0.0
        %759 = vmatpush.xpose.msra.mxu0 %v344
        %760 = vmatmul.f32.gmra.mxu0 %v257
        %v761 = vpop.f32.mrf.mxu0
        %v762 = vadd.f32 %v739, %v761
        %763 = vmatmul.f32.gmra.mxu0 %v281
        %v764 = vpop.f32.mrf.mxu0
        %v765 = vadd.f32 %v742, %v764
        %766 = vdwg.mxu0
        %767 = vmatpush.xpose.msra.mxu0 0.0
        %768 = vmatpush.xpose.msra.mxu0 0.0
        %769 = vmatpush.xpose.msra.mxu0 0.0
        %770 = vmatpush.xpose.msra.mxu0 0.0
        %771 = vmatpush.xpose.msra.mxu0 0.0
        %772 = vmatpush.xpose.msra.mxu0 0.0
        %773 = vmatpush.xpose.msra.mxu0 0.0
        %774 = vmatpush.xpose.msra.mxu0 0.0
        %775 = vmatpush.xpose.msra.mxu0 0.0
        %776 = vmatpush.xpose.msra.mxu0 0.0
        %777 = vmatpush.xpose.msra.mxu0 0.0
        %778 = vmatpush.xpose.msra.mxu0 0.0
        %779 = vmatpush.xpose.msra.mxu0 0.0
        %780 = vmatpush.xpose.msra.mxu0 0.0
        %781 = vmatpush.xpose.msra.mxu0 0.0
        %782 = vmatpush.xpose.msra.mxu0 %v345
        %783 = vmatmul.f32.gmra.mxu0 %v258
        %v784 = vpop.f32.mrf.mxu0
        %v785 = vadd.f32 %v762, %v784
        %786 = vmatmul.f32.gmra.mxu0 %v282
        %v787 = vpop.f32.mrf.mxu0
        %v788 = vadd.f32 %v765, %v787
        %789 = vdwg.mxu0
        %790 = vmatpush.xpose.msra.mxu0 0.0
        %791 = vmatpush.xpose.msra.mxu0 0.0
        %792 = vmatpush.xpose.msra.mxu0 0.0
        %793 = vmatpush.xpose.msra.mxu0 0.0
        %794 = vmatpush.xpose.msra.mxu0 0.0
        %795 = vmatpush.xpose.msra.mxu0 0.0
        %796 = vmatpush.xpose.msra.mxu0 0.0
        %797 = vmatpush.xpose.msra.mxu0 0.0
        %798 = vmatpush.xpose.msra.mxu0 0.0
        %799 = vmatpush.xpose.msra.mxu0 0.0
        %800 = vmatpush.xpose.msra.mxu0 0.0
        %801 = vmatpush.xpose.msra.mxu0 0.0
        %802 = vmatpush.xpose.msra.mxu0 0.0
        %803 = vmatpush.xpose.msra.mxu0 0.0
        %804 = vmatpush.xpose.msra.mxu0 0.0
        %805 = vmatpush.xpose.msra.mxu0 %v346
        %806 = vmatmul.f32.gmra.mxu0 %v259
        %v807 = vpop.f32.mrf.mxu0
        %v808 = vadd.f32 %v785, %v807
        %809 = vmatmul.f32.gmra.mxu0 %v283
        %v810 = vpop.f32.mrf.mxu0
        %v811 = vadd.f32 %v788, %v810
        %812 = vdwg.mxu0
        %813 = vmatpush.xpose.msra.mxu0 0.0
        %814 = vmatpush.xpose.msra.mxu0 0.0
        %815 = vmatpush.xpose.msra.mxu0 0.0
        %816 = vmatpush.xpose.msra.mxu0 0.0
        %817 = vmatpush.xpose.msra.mxu0 0.0
        %818 = vmatpush.xpose.msra.mxu0 0.0
        %819 = vmatpush.xpose.msra.mxu0 0.0
        %820 = vmatpush.xpose.msra.mxu0 0.0
        %821 = vmatpush.xpose.msra.mxu0 0.0
        %822 = vmatpush.xpose.msra.mxu0 0.0
        %823 = vmatpush.xpose.msra.mxu0 0.0
        %824 = vmatpush.xpose.msra.mxu0 0.0
        %825 = vmatpush.xpose.msra.mxu0 0.0
        %826 = vmatpush.xpose.msra.mxu0 0.0
        %827 = vmatpush.xpose.msra.mxu0 0.0
        %828 = vmatpush.xpose.msra.mxu0 %v347
        %829 = vmatmul.f32.gmra.mxu0 %v260
        %v830 = vpop.f32.mrf.mxu0
        %v831 = vadd.f32 %v808, %v830
        %832 = vmatmul.f32.gmra.mxu0 %v284
        %v833 = vpop.f32.mrf.mxu0
        %v834 = vadd.f32 %v811, %v833
        %835 = vdwg.mxu0
        %836 = vmatpush.xpose.msra.mxu0 0.0
        %837 = vmatpush.xpose.msra.mxu0 0.0
        %838 = vmatpush.xpose.msra.mxu0 0.0
        %839 = vmatpush.xpose.msra.mxu0 0.0
        %840 = vmatpush.xpose.msra.mxu0 0.0
        %841 = vmatpush.xpose.msra.mxu0 0.0
        %842 = vmatpush.xpose.msra.mxu0 0.0
        %843 = vmatpush.xpose.msra.mxu0 0.0
        %844 = vmatpush.xpose.msra.mxu0 0.0
        %845 = vmatpush.xpose.msra.mxu0 0.0
        %846 = vmatpush.xpose.msra.mxu0 0.0
        %847 = vmatpush.xpose.msra.mxu0 0.0
        %848 = vmatpush.xpose.msra.mxu0 0.0
        %849 = vmatpush.xpose.msra.mxu0 0.0
        %850 = vmatpush.xpose.msra.mxu0 0.0
        %851 = vmatpush.xpose.msra.mxu0 %v348
        %852 = vmatmul.f32.gmra.mxu0 %v261
        %v853 = vpop.f32.mrf.mxu0
        %v854 = vadd.f32 %v831, %v853
        %855 = vmatmul.f32.gmra.mxu0 %v285
        %v856 = vpop.f32.mrf.mxu0
        %v857 = vadd.f32 %v834, %v856
        %858 = vdwg.mxu0
        %859 = vmatpush.xpose.msra.mxu0 0.0
        %860 = vmatpush.xpose.msra.mxu0 0.0
        %861 = vmatpush.xpose.msra.mxu0 0.0
        %862 = vmatpush.xpose.msra.mxu0 0.0
        %863 = vmatpush.xpose.msra.mxu0 0.0
        %864 = vmatpush.xpose.msra.mxu0 0.0
        %865 = vmatpush.xpose.msra.mxu0 0.0
        %866 = vmatpush.xpose.msra.mxu0 0.0
        %867 = vmatpush.xpose.msra.mxu0 0.0
        %868 = vmatpush.xpose.msra.mxu0 0.0
        %869 = vmatpush.xpose.msra.mxu0 0.0
        %870 = vmatpush.xpose.msra.mxu0 0.0
        %871 = vmatpush.xpose.msra.mxu0 0.0
        %872 = vmatpush.xpose.msra.mxu0 0.0
        %873 = vmatpush.xpose.msra.mxu0 0.0
        %874 = vmatpush.xpose.msra.mxu0 %v349
        %875 = vmatmul.f32.gmra.mxu0 %v262
        %v876 = vpop.f32.mrf.mxu0
        %v877 = vadd.f32 %v854, %v876
        %878 = vmatmul.f32.gmra.mxu0 %v286
        %v879 = vpop.f32.mrf.mxu0
        %v880 = vadd.f32 %v857, %v879
        %881 = vdwg.mxu0
        %882 = vmatpush.xpose.msra.mxu0 0.0
        %883 = vmatpush.xpose.msra.mxu0 0.0
        %884 = vmatpush.xpose.msra.mxu0 0.0
        %885 = vmatpush.xpose.msra.mxu0 0.0
        %886 = vmatpush.xpose.msra.mxu0 0.0
        %887 = vmatpush.xpose.msra.mxu0 0.0
        %888 = vmatpush.xpose.msra.mxu0 0.0
        %889 = vmatpush.xpose.msra.mxu0 0.0
        %890 = vmatpush.xpose.msra.mxu0 0.0
        %891 = vmatpush.xpose.msra.mxu0 0.0
        %892 = vmatpush.xpose.msra.mxu0 0.0
        %893 = vmatpush.xpose.msra.mxu0 0.0
        %894 = vmatpush.xpose.msra.mxu0 0.0
        %895 = vmatpush.xpose.msra.mxu0 0.0
        %896 = vmatpush.xpose.msra.mxu0 0.0
        %897 = vmatpush.xpose.msra.mxu0 %v350
        %898 = vmatmul.f32.gmra.mxu0 %v263
        %v899 = vpop.f32.mrf.mxu0
        %v900 = vadd.f32 %v877, %v899
        %901 = vmatmul.f32.gmra.mxu0 %v287
        %v902 = vpop.f32.mrf.mxu0
        %v903 = vadd.f32 %v880, %v902
        %904 = vdwg.mxu0
        %905 = vmatpush.xpose.msra.mxu0 0.0
        %906 = vmatpush.xpose.msra.mxu0 0.0
        %907 = vmatpush.xpose.msra.mxu0 0.0
        %908 = vmatpush.xpose.msra.mxu0 0.0
        %909 = vmatpush.xpose.msra.mxu0 0.0
        %910 = vmatpush.xpose.msra.mxu0 0.0
        %911 = vmatpush.xpose.msra.mxu0 0.0
        %912 = vmatpush.xpose.msra.mxu0 0.0
        %913 = vmatpush.xpose.msra.mxu0 0.0
        %914 = vmatpush.xpose.msra.mxu0 0.0
        %915 = vmatpush.xpose.msra.mxu0 0.0
        %916 = vmatpush.xpose.msra.mxu0 0.0
        %917 = vmatpush.xpose.msra.mxu0 0.0
        %918 = vmatpush.xpose.msra.mxu0 0.0
        %919 = vmatpush.xpose.msra.mxu0 0.0
        %920 = vmatpush.xpose.msra.mxu0 %v351
        %921 = vmatmul.f32.gmra.mxu0 %v264
        %v922 = vpop.f32.mrf.mxu0
        %v923 = vadd.f32 %v900, %v922
        %924 = vmatmul.f32.gmra.mxu0 %v288
        %v925 = vpop.f32.mrf.mxu0
        %v926 = vadd.f32 %v903, %v925
        %927 = vdwg.mxu0
        %v928 = vld [vmem:[#allocation7] sm:$0xf]
        %vm929 = vcmask 31744
        %v931 = vsel %vm929, %v923, 0
        %v934 = vsel %vm929, %v926, 0
        %vm936 = vcmask 1043456
        %v938 = vsel %vm936, %v928, 0
        %940 = vmatpush.msra.mxu0 0.0
        %941 = vmatpush.msra.mxu0 0.0
        %942 = vmatpush.msra.mxu0 0.0
        %943 = vmatpush.msra.mxu0 0.0
        %944 = vmatpush.msra.mxu0 0.0
        %945 = vmatpush.msra.mxu0 0.0
        %946 = vmatpush.msra.mxu0 0.0
        %947 = vmatpush.msra.mxu0 0.0
        %948 = vmatpush.msra.mxu0 0.0
        %949 = vmatpush.msra.mxu0 0.0
        %950 = vmatpush.msra.mxu0 0.0
        %951 = vmatpush.msra.mxu0 0.0
        %952 = vmatpush.msra.mxu0 0.0
        %953 = vmatpush.msra.mxu0 0.0
        %954 = vmatpush.msra.mxu0 0.0
        %955 = vmatpush.msra.mxu0 %v938
        %956 = vmatmul.f32.gmra.mxu0 %v931
        %v957 = vpop.f32.mrf.mxu0
        %v958 = vadd.f32 0.0, %v957
        %959 = vmatmul.f32.gmra.mxu0 %v934
        %v960 = vpop.f32.mrf.mxu0
        %v961 = vadd.f32 0.0, %v960
        %962 = vdwg.mxu0
        %963 = vst [vmem:[%s238] sm:$0xff] %v958
        %964 = vst [vmem:[%s238 + $0x8] sm:$0xff] %v961
        %s965 = sand.u32 %s113, 1
        %s966 = scalar_lea.sflag [#allocation4], %s965
        %s967 = sand.u32 %s113, 1
        %s968 = smul.addr %s967, 16
        %s969 = scalar_lea.vmem [#allocation8], %s968
        // Predicated region
        $region45: #{tpu_custom_call.1} parent=31 // pred_check
          %p970 = pneg %p123
        $region46: #{tpu_custom_call.1} parent=31 // pred_check_branch
          %972 = sbr.rel (%p970) target = $region48
        $region47: #{tpu_custom_call.1} parent=31 // pred_region
          %s973 = smul.u32 2, %s26
          %975 = vsyncadd %s966, 0
          %s976 = smul.addr %s25, 2
          %s977 = sadd.s32 %s973, %s976
          %s978 = smul.addr %s977, 8
          %s979 = scalar_lea.hbm %s3, %s978
          %s980 = sshll.u32 %s969, 4
          %s981 = int_to_ptr.vmem [resolvable:$true] %s980
          %s982 = sshll.u32 %s979, 4
          %s983 = int_to_ptr.hbm [resolvable:$true] %s982
          %988 = dma.vmem_to_hbm [thread:$0]  %s981, 256, %s983, %s966, 128, 128, 8
        $region48: #{tpu_custom_call.1} parent=31 // pred_fallthru
          _
      $region32: #{tpu_custom_call.1} parent=5 // pred_fallthru
        _
      %p989 = scmp.le.s32.totalorder 2, %s16
      // Predicated region
      $region49: #{tpu_custom_call.1} parent=5 // pred_check
        %p990 = pneg %p989
      $region50: #{tpu_custom_call.1} parent=5 // pred_check_branch
        %992 = sbr.rel (%p990) target = $region52
      $region51: #{tpu_custom_call.1} parent=5 // pred_region
        %s993 = ssub.s32 %s16, 2
        // Predicated region
        $region53: #{tpu_custom_call.1} parent=51 // pred_check
          %p994 = pneg %p129
        $region54: #{tpu_custom_call.1} parent=51 // pred_check_branch
          %996 = sbr.rel (%p994) target = $region56
        $region55: #{tpu_custom_call.1} parent=51 // pred_region
          %s997 = sand.u32 %s114, 1
          %s998 = scalar_lea.sflag [#allocation4], %s997
          %s999 = sand.u32 %s114, 1
          %s1000 = smul.addr %s999, 16
          %s1001 = scalar_lea.vmem [#allocation8], %s1000
          %1003 = dma.done %s998, 256
        $region56: #{tpu_custom_call.1} parent=51 // pred_fallthru
          _
      $region52: #{tpu_custom_call.1} parent=5 // pred_fallthru
        _
    $region6: #{tpu_custom_call.1} parent=1 // loop_footer
      %s20 = sadd.s32 1, %s16
    $region7: #{tpu_custom_call.1} parent=1 // loop_footer_branch
      %15 = sbr.rel target = $region3
    $region8: #{tpu_custom_call.1} parent=1 // loop_exit
      _
    %1004 = vsyncpa [#allocation3], 1
    %s1005 = scalar_lea.sflag [#allocation3], 1
    %1006 = vsyncpa %s1005, 1
    %1007 = vsyncpa [#allocation6], 1
    %1008 = vsyncpa [#allocation4], 1
    %s1009 = scalar_lea.sflag [#allocation4], 1
    %1010 = vsyncpa %s1009, 1

</llo_original>
